<compile_context>
chip_gen: v7x
topology: tpu7x:2x2x1
jax: 0.10.0
libtpu: 0.0.40
codegen_flags: <defaults>
</compile_context>

<pallas_src>
import functools

import jax
import jax.numpy as jnp
from jax.experimental import pallas as pl
from jax.experimental.pallas import tpu as pltpu


# ---------------------------------------------------------------------------
# Irreps helpers (minimal reimplementation of what Identity.__init__ needs).
# Irreps are a list of (mul, l) pairs; dim = sum(mul * (2l + 1)).
# ---------------------------------------------------------------------------
IRREPS = [(8, 0), (8, 1)]  # "8x0e + 8x1o" -> dim = 8*1 + 8*3 = 32


def irreps_dim(irreps):
    return sum(mul * (2 * l + 1) for mul, l in irreps)


def make_output_mask(irreps):
    # torch.cat of per-irrep ones == all ones of length dim.
    return jnp.ones((irreps_dim(irreps),), dtype=jnp.float32)


# ---------------------------------------------------------------------------
# Pallas identity (copy) kernel: direct HBM -> HBM DMA, no VMEM staging.
# ---------------------------------------------------------------------------
_MAX_SLABS = 4            # few large DMAs; DMA engines run them concurrently
_MIN_SLAB_BYTES = 512 * 1024
_DEFAULT_MIN_COPY_BYTES = 1 << 20  # below this the no-kernel path always wins


def _hbm_copy_kernel(row_splits, x_ref, o_ref, sems):
    """Copy x_ref -> o_ref with one DMA per slab (slabs are static).

    row_splits: static tuple of (start, size) along axis 0; empty tuple means
    a single whole-array DMA.
    """
    copies = []
    if not row_splits:
        cp = pltpu.make_async_copy(x_ref, o_ref, sems.at[0])
        cp.start()
        copies.append(cp)
    else:
        for i, (start, size) in enumerate(row_splits):
            cp = pltpu.make_async_copy(
                x_ref.at[pl.ds(start, size)],
                o_ref.at[pl.ds(start, size)],
                sems.at[i],
            )
            cp.start()
            copies.append(cp)
    # All DMAs are in flight; now drain them.
    for cp in copies:
        cp.wait()


def _identity_copy(features):
    """Materialized identity: copies `features` to a fresh HBM buffer."""
    shape = features.shape
    itemsize = jnp.dtype(features.dtype).itemsize
    total_bytes = features.size * itemsize

    # Slab the leading axis into a few big DMAs (static python decision).
    leading = shape[0] if features.ndim >= 1 else 1
    nslabs = 1
    if features.ndim >= 1 and leading >= 2 and total_bytes >= 2 * _MIN_SLAB_BYTES:
        nslabs = min(_MAX_SLABS, leading, max(1, total_bytes // _MIN_SLAB_BYTES))

    if nslabs <= 1:
        row_splits = ()  # single whole-array DMA
        nsems = 1
    else:
        slab = (leading + nslabs - 1) // nslabs
        row_splits = []
        start = 0
        while start < leading:
            size = min(slab, leading - start)
            row_splits.append((start, size))
            start += size
        row_splits = tuple(row_splits)
        nsems = len(row_splits)

    kernel = functools.partial(_hbm_copy_kernel, row_splits)

    return pl.pallas_call(
        kernel,
        out_shape=jax.ShapeDtypeStruct(shape, features.dtype),
        in_specs=[pl.BlockSpec(memory_space=pl.ANY)],    # raw HBM ref
        out_specs=pl.BlockSpec(memory_space=pl.ANY),     # raw HBM ref
        scratch_shapes=[pltpu.SemaphoreType.DMA((nsems,))],
        cost_estimate=pl.CostEstimate(
            flops=0, transcendentals=0, bytes_accessed=2 * total_bytes
        ),
    )(features)


_identity_copy_jit = jax.jit(_identity_copy)


def identity_forward(features, *, materialize=False,
                     min_copy_bytes=_DEFAULT_MIN_COPY_BYTES):
    """Identity forward: returns `features` unchanged.

    materialize=False (default) -> true zero-cost identity (no kernel).
    materialize=True            -> Pallas HBM->HBM DMA copy, except for
                                   tensors below `min_copy_bytes` (kernel
                                   dispatch would dominate; identical result).
    """
    if not materialize:
        return features
    if features.ndim == 0 or features.size == 0:
        return features
    if features.size * jnp.dtype(features.dtype).itemsize < min_copy_bytes:
        return features
    return _identity_copy_jit(features)


class IdentityPallas:
    """JAX/Pallas equivalent of e3nn_little Identity."""

    def __init__(self, irreps_in, irreps_out, *, materialize=False,
                 min_copy_bytes=_DEFAULT_MIN_COPY_BYTES):
        # Simplified irreps are assumed equal (mirrors the PyTorch assert).
        assert irreps_in == irreps_out
        self.irreps_in = irreps_in
        self.irreps_out = irreps_out
        self.materialize = materialize
        self.min_copy_bytes = min_copy_bytes
        self.output_mask = make_output_mask(irreps_out)  # constant ones buffer

    def __call__(self, features):
        return identity_forward(
            features,
            materialize=self.materialize,
            min_copy_bytes=self.min_copy_bytes,
        )

    def __repr__(self):
        return f"IdentityPallas({self.irreps_in} -> {self.irreps_out})"


if __name__ == "__main__":
    key = jax.random.PRNGKey(0)

    batch, seq = 2, 8
    dim = irreps_dim(IRREPS)  # 32

    features = jax.random.normal(key, (batch, seq, dim), dtype=jnp.float32)

    # Force the Pallas DMA-copy path even on tiny inputs (min_copy_bytes=0)
    # so the kernel is actually exercised.
    module = IdentityPallas(IRREPS, IRREPS, materialize=True, min_copy_bytes=0)
    out = jax.block_until_ready(module(features))
    assert out.shape == features.shape
    assert out.dtype == features.dtype
    assert bool(jnp.array_equal(out, features))

    # Ragged leading dims: handled with a single whole-array DMA — no padding,
    # no reshape, no slice-back anywhere.
    f2 = jax.random.normal(jax.random.PRNGKey(1), (3, 5, dim), dtype=jnp.float32)
    out2 = jax.block_until_ready(module(f2))
    assert out2.shape == f2.shape
    assert bool(jnp.array_equal(out2, f2))

    # Larger input (2 MiB): exercises the multi-slab concurrent-DMA path.
    f3 = jax.random.normal(jax.random.PRNGKey(2), (8, 2048, dim), dtype=jnp.float32)
    out3 = jax.block_until_ready(module(f3))
    assert out3.shape == f3.shape
    assert bool(jnp.array_equal(out3, f3))

    # Default (materialize=False) zero-cost path — matches PyTorch semantics.
    fast = IdentityPallas(IRREPS, IRREPS)
    assert bool(jnp.array_equal(fast(features), features))

    assert module.output_mask.shape == (dim,)
    assert bool(jnp.all(module.output_mask == 1.0))

    print("KERNEL_OK")
</pallas_src>

<mosaic_0001>
module attributes {stable_mosaic.version = 11 : i64} {
  func.func @_hbm_copy_kernel(%arg0: memref<2x8x32xf32, #tpu.memory_space<any>>, %arg1: memref<2x8x32xf32, #tpu.memory_space<any>>, %arg2: memref<1x!tpu.dma_semaphore, #tpu.memory_space<semaphore_mem>>) attributes {dimension_semantics = [], scalar_prefetch = 0 : i64, scratch_operands = 1 : i64, tpu.core_type = #tpu.core_type<tc>} {
    %c0_i32 = arith.constant 0 : i32
    %0 = tpu.memref_slice %arg2[%c0_i32] : memref<1x!tpu.dma_semaphore, #tpu.memory_space<semaphore_mem>> -> memref<1x!tpu.dma_semaphore, #tpu.memory_space<semaphore_mem>>
    %1 = tpu.memref_squeeze %0 : memref<1x!tpu.dma_semaphore, #tpu.memory_space<semaphore_mem>> -> memref<!tpu.dma_semaphore, #tpu.memory_space<semaphore_mem>>
    tpu.enqueue_dma source(%arg0 : memref<2x8x32xf32, #tpu.memory_space<any>>) target(%arg1 : memref<2x8x32xf32, #tpu.memory_space<any>>) target_semaphore(%1 : memref<!tpu.dma_semaphore, #tpu.memory_space<semaphore_mem>>)
    %c0_i32_0 = arith.constant 0 : i32
    %2 = tpu.memref_slice %arg2[%c0_i32_0] : memref<1x!tpu.dma_semaphore, #tpu.memory_space<semaphore_mem>> -> memref<1x!tpu.dma_semaphore, #tpu.memory_space<semaphore_mem>>
    %3 = tpu.memref_squeeze %2 : memref<1x!tpu.dma_semaphore, #tpu.memory_space<semaphore_mem>> -> memref<!tpu.dma_semaphore, #tpu.memory_space<semaphore_mem>>
    tpu.wait_dma2 semaphore(%3 : memref<!tpu.dma_semaphore, #tpu.memory_space<semaphore_mem>>) src(%arg0 : memref<2x8x32xf32, #tpu.memory_space<any>>) dst(%arg1 : memref<2x8x32xf32, #tpu.memory_space<any>>)
    return
  }
}

</mosaic_0001>

<llo_original>
// kernel: _identity_copy.1
$region0: #{_identity_copy.1}
  #allocation0 [shape = 'u32[]', space=smem, size = 0x4, offset = 0x4, fixed_abs, tag = 'smem constant byte address 0x4 - core index']
  #allocation1 [shape = 'u32[144,128]{1,0:T(1,128)}', space=vmem, size = 0x12000, scoped, tag = 'internal scratch']
  #allocation2 [shape = 's32[1]{0}', space=sflag, size = 0x4, scoped, tag = 'scratch operand']
  #allocation3 [shape = 's32[]', space=sflag, size = 0x4, offset = 0, fixed_abs, tag = 'sflag constant byte address 0x0 - dummy sync flag']
  #allocation4 [shape = 'u32[0]{0}', space=smem, size = 0, offset = 0, fixed_abs, tag = 'smem constant byte address 0x0 - null']
  %s0 = inlined_call_operand.hbm [shape: f32[2,8,32], index: 0, kind: input, shape index: {}]
  %s1 = inlined_call_operand.hbm [shape: f32[2,8,32], index: 1, kind: output, shape index: {}]
  %s2 = sld [smem:[#allocation0]]
  $region2: #{_identity_copy.1} parent=0
    _
  %s4 = ssub.s32 1, %s2
  %s5 = scalar_select 0, %s4, %s2
  %s7 = sshll.u32 1, 14
  %s8 = sxor.u32 4294967295, %s7
  %s11 = sshll.u32 3, 24
  %s12 = sxor.u32 4294967295, %s11
  %s13 = sand.u32 0, %s12
  %s15 = sor.u32 %s13, 0
  %18 = dma.general %s0, 256, %s1, [#allocation2], [#allocation3], [#allocation4], %s15, 0
  %s19 = smul.u32 2, 8
  %s20 = smul.u32 %s19, 1
  %s21 = sshll.u32 %s20, 4
  %22 = dma.done [#allocation2], %s21
  %23 = vsyncmov [#allocation2]
  %s24 = vpop.sfrf %23
  %p25 = scmp.eq.s32.totalorder %s24, 0
  %p26 = pneg %p25
  %28 = shalt.err (%p26)

</llo_original>
